<compile_context>
chip_gen: v6e
topology: v6e:2x2x1
jax: 0.10.0
libtpu: 0.0.40
codegen_flags: <defaults>
</compile_context>

<pallas_src>
import jax
import jax.numpy as jnp
from jax.experimental import pallas as pl
from jax.experimental.pallas import tpu as pltpu

INPUT_SIZE = 256   # hard-coded in the PyTorch module (__init__ overrides arg)
LANES = 128        # TPU vreg lane width
SUBLANES = 8       # TPU vreg sublane count


# --------------------------------------------------------------------------
# Kernels
# --------------------------------------------------------------------------
def _vpu_scalar_kernel(h_ref, w_ref, b_ref, o_ref):
    """output_size == 1: VPU multiply + lane reduction, no MXU.

    h_ref: (1, 256) VMEM   flattened (detached) hidden state
    w_ref: (1, 256) VMEM   fc weight row
    b_ref: (1, 1)   SMEM   fc bias scalar
    o_ref: (1, 1)   VMEM   baseline value
    """
    # Multiply in the native (promoted) dtype — bf16 VPU on v6e/v7x is native;
    # accumulate the reduction in f32.
    prod = (h_ref[...] * w_ref[...]).astype(jnp.float32)        # (1, 256)
    s = jnp.sum(prod, axis=-1, keepdims=True)                    # (1, 1)
    o_ref[...] = (s + b_ref[0, 0].astype(jnp.float32)).astype(o_ref.dtype)


def _gemv_kernel(h_ref, w_ref, b_ref, o_ref):
    """General path: h @ W^T + b with W kept in PyTorch (N, 256) layout.

    h_ref: (1, 256)  VMEM
    w_ref: (N, 256)  VMEM   (no wrapper transpose; contract last axes in-kernel)
    b_ref: (1, N)    VMEM
    o_ref: (1, N)    VMEM
    """
    acc = jax.lax.dot_general(
        h_ref[...], w_ref[...],
        dimension_numbers=(((1,), (1,)), ((), ())),
        preferred_element_type=jnp.float32)                      # (1, N)
    o_ref[...] = (acc + b_ref[...].astype(jnp.float32)).astype(o_ref.dtype)


def _batched_kernel(h_ref, wt_ref, b_ref, o_ref):
    """Batched-over-timesteps path: one (T_tile,256)x(256,N_pad) MXU matmul.

    h_ref:  (T_tile, 256)    VMEM
    wt_ref: (256, N_pad)     VMEM   W^T, pre-padded once at param-prep time
    b_ref:  (1, N_pad)       VMEM   bias, pre-padded once
    o_ref:  (T_tile, N_pad)  VMEM   lane-dense output slab (unmasked vst)
    """
    acc = jnp.dot(h_ref[...], wt_ref[...],
                  preferred_element_type=jnp.float32)            # (T_tile, N_pad)
    o_ref[...] = (acc + b_ref[...].astype(jnp.float32)).astype(o_ref.dtype)


# --------------------------------------------------------------------------
# Single-call forward (matches BaselineNetwork.forward exactly)
# --------------------------------------------------------------------------
def _baseline_forward(h_t, weight, bias):
    output_size = weight.shape[0]
    out_dtype = jnp.result_type(h_t.dtype, weight.dtype, bias.dtype)

    # flatten(start_dim=0) -> 1D vector of 256; .detach() -> stop_gradient
    h_flat = jax.lax.stop_gradient(h_t).reshape(-1)
    assert h_flat.shape[0] == INPUT_SIZE, (
        f"BaselineNetwork expects {INPUT_SIZE} elements, got {h_flat.shape[0]}")
    h_row = h_flat.reshape(1, INPUT_SIZE)

    vmem = pl.BlockSpec(memory_space=pltpu.MemorySpace.VMEM)
    smem = pl.BlockSpec(memory_space=pltpu.MemorySpace.SMEM)

    if output_size == 1:
        b_scalar = bias.reshape(1, 1)
        if b_scalar.dtype.itemsize != 4:           # SMEM wants 32-bit scalars
            b_scalar = b_scalar.astype(jnp.float32)
        return pl.pallas_call(
            _vpu_scalar_kernel,
            out_shape=jax.ShapeDtypeStruct((1, 1), out_dtype),
            in_specs=[vmem, vmem, smem],
            out_specs=vmem,
            cost_estimate=pl.CostEstimate(
                flops=2 * INPUT_SIZE + 1,
                transcendentals=0,
                bytes_accessed=(2 * INPUT_SIZE + 2) * 4),
        )(h_row, weight.reshape(1, INPUT_SIZE), b_scalar)        # (1, 1)

    b_row = bias.reshape(1, output_size)
    return pl.pallas_call(
        _gemv_kernel,
        out_shape=jax.ShapeDtypeStruct((1, output_size), out_dtype),
        in_specs=[vmem, vmem, vmem],
        out_specs=vmem,
        cost_estimate=pl.CostEstimate(
            flops=2 * INPUT_SIZE * output_size + output_size,
            transcendentals=0,
            bytes_accessed=(INPUT_SIZE
                            + INPUT_SIZE * output_size
                            + 2 * output_size) * 4),
    )(h_row, weight, b_row)                                      # (1, output_size)


@jax.custom_vjp
def baseline_network(h_t, weight, bias):
    """b_t = Linear(256 -> output_size)(h_t.flatten().detach()).unsqueeze(0)."""
    return _baseline_forward(h_t, weight, bias)


def _baseline_fwd(h_t, weight, bias):
    out = _baseline_forward(h_t, weight, bias)
    return out, (jax.lax.stop_gradient(h_t), weight, bias)


def _baseline_bwd(res, g):
    h_t, weight, bias = res
    h_flat = h_t.reshape(-1).astype(jnp.float32)                 # (256,)
    g_row = g.reshape(-1).astype(jnp.float32)                    # (output_size,)
    d_w = (g_row[:, None] * h_flat[None, :]).astype(weight.dtype)  # (N, 256)
    d_b = g_row.astype(bias.dtype)                               # (N,)
    d_h = jnp.zeros_like(h_t)                                    # .detach()
    return d_h, d_w, d_b


baseline_network.defvjp(_baseline_fwd, _baseline_bwd)


# --------------------------------------------------------------------------
# Batched-over-timesteps path (amortizes the fixed per-call cost)
# --------------------------------------------------------------------------
def prepare_baseline_params(weight, bias):
    """One-time (init-time) layout prep — hoisted out of forward()."""
    output_size = weight.shape[0]
    n_pad = max(LANES, -(-output_size // LANES) * LANES)          # multiple of 128
    w_t_pad = jnp.zeros((INPUT_SIZE, n_pad), weight.dtype)
    w_t_pad = w_t_pad.at[:, :output_size].set(weight.T)
    b_pad = jnp.zeros((1, n_pad), bias.dtype).at[0, :output_size].set(bias)
    return {"w_t_pad": w_t_pad, "b_pad": b_pad,
            "output_size": output_size, "n_pad": n_pad}


def baseline_network_batched(h_ts, params, *, t_tile=None):
    """Baseline for T stacked hidden states at once.

    h_ts: (T, 256) stacked (detached) hidden states; returns (T, output_size).
    """
    T = h_ts.shape[0]
    h = jax.lax.stop_gradient(h_ts).reshape(T, INPUT_SIZE)
    output_size, n_pad = params["output_size"], params["n_pad"]
    w_t_pad, b_pad = params["w_t_pad"], params["b_pad"]
    out_dtype = jnp.result_type(h.dtype, w_t_pad.dtype, b_pad.dtype)

    if t_tile is None:
        t_tile = min(T, 128)
    assert T % t_tile == 0 and t_tile % SUBLANES == 0, (T, t_tile)

    # TODO(synk): on v5e a K=128 inner tile would match its 128x128 MXU, but
    # with K fixed at 256 total the whole contraction fits one block anyway.
    out_pad = pl.pallas_call(
        _batched_kernel,
        out_shape=jax.ShapeDtypeStruct((T, n_pad), out_dtype),
        grid_spec=pltpu.PrefetchScalarGridSpec(
            num_scalar_prefetch=0,
            grid=(T // t_tile,),
            in_specs=[pl.BlockSpec((t_tile, INPUT_SIZE), lambda i: (i, 0)),
                      pl.BlockSpec((INPUT_SIZE, n_pad), lambda i: (0, 0)),
                      pl.BlockSpec((1, n_pad), lambda i: (0, 0))],
            out_specs=pl.BlockSpec((t_tile, n_pad), lambda i: (i, 0)),
        ),
        compiler_params=pltpu.CompilerParams(
            dimension_semantics=("parallel",)),   # shards across v7x's 2 TCs
        cost_estimate=pl.CostEstimate(
            flops=2 * T * INPUT_SIZE * n_pad,
            transcendentals=0,
            bytes_accessed=(T * INPUT_SIZE + INPUT_SIZE * n_pad
                            + n_pad + T * n_pad) * 4),
    )(h, w_t_pad, b_pad)

    return out_pad[:, :output_size]   # one slice, amortized over all T rows


# --------------------------------------------------------------------------
# Self-test
# --------------------------------------------------------------------------
if __name__ == "__main__":
    key = jax.random.PRNGKey(0)
    k_h, k_w, k_b, k_w2, k_b2, k_ht = jax.random.split(key, 6)

    # hidden state of the core network: (B, H) with B*H = 256
    h_t = jax.random.normal(k_h, (1, 256), dtype=jnp.float32)
    bound = 1.0 / (INPUT_SIZE ** 0.5)

    # --- real use case: scalar baseline (output_size = 1), VPU + SMEM path --
    weight = jax.random.uniform(k_w, (1, INPUT_SIZE), jnp.float32,
                                minval=-bound, maxval=bound)
    bias = jax.random.uniform(k_b, (1,), jnp.float32,
                              minval=-bound, maxval=bound)

    b_t = baseline_network(h_t, weight, bias)
    jax.block_until_ready(b_t)
    ref = (h_t.reshape(-1) @ weight.T + bias).reshape(1, 1)
    assert b_t.shape == (1, 1), b_t.shape
    assert jnp.allclose(b_t, ref, atol=1e-5, rtol=1e-5), (b_t, ref)

    # --- gradient path (fc trains through the baseline loss) ----------------
    def loss(w, b):
        return jnp.sum(baseline_network(h_t, w, b))

    d_w, d_b = jax.grad(loss, argnums=(0, 1))(weight, bias)
    jax.block_until_ready((d_w, d_b))
    assert jnp.allclose(d_w, h_t.reshape(1, -1), atol=1e-5, rtol=1e-5)
    assert jnp.allclose(d_b, jnp.ones_like(bias), atol=1e-5)
    d_h = jax.grad(lambda h: jnp.sum(baseline_network(h, weight, bias)))(h_t)
    assert jnp.allclose(d_h, jnp.zeros_like(h_t))     # .detach() semantics

    # --- generic path check (output_size > 1), in-kernel transposed GEMV ----
    output_size2 = 10
    weight2 = jax.random.uniform(k_w2, (output_size2, INPUT_SIZE), jnp.float32,
                                 minval=-bound, maxval=bound)
    bias2 = jax.random.uniform(k_b2, (output_size2,), jnp.float32,
                               minval=-bound, maxval=bound)

    b_t2 = baseline_network(h_t, weight2, bias2)
    jax.block_until_ready(b_t2)
    ref2 = (h_t.reshape(-1) @ weight2.T + bias2).reshape(1, output_size2)
    assert b_t2.shape == (1, output_size2), b_t2.shape
    assert jnp.allclose(b_t2, ref2, atol=1e-5, rtol=1e-5), (b_t2, ref2)

    # --- batched-over-timesteps path (amortized launch/DMA cost) ------------
    T = 128
    h_ts = jax.random.normal(k_ht, (T, 256), dtype=jnp.float32)
    params = prepare_baseline_params(weight, bias)     # hoisted, once
    b_ts = baseline_network_batched(h_ts, params, t_tile=64)
    jax.block_until_ready(b_ts)
    ref_b = h_ts @ weight.T + bias
    assert b_ts.shape == (T, 1), b_ts.shape
    assert jnp.allclose(b_ts, ref_b, atol=1e-4, rtol=1e-4)

    print("KERNEL_OK")
</pallas_src>

<mosaic_0001>
module attributes {stable_mosaic.version = 11 : i64} {
  func.func @_vpu_scalar_kernel(%arg0: memref<1x256xf32, #tpu.memory_space<vmem>>, %arg1: memref<1x256xf32, #tpu.memory_space<vmem>>, %arg2: memref<1x1xf32, #tpu.memory_space<smem>>, %arg3: memref<1x1xf32, #tpu.memory_space<vmem>>) attributes {dimension_semantics = [], scalar_prefetch = 0 : i64, scratch_operands = 0 : i64, tpu.core_type = #tpu.core_type<tc>} {
    %c0 = arith.constant 0 : index
    %c0_0 = arith.constant 0 : index
    %0 = vector.load %arg0[%c0, %c0_0] : memref<1x256xf32, #tpu.memory_space<vmem>>, vector<1x256xf32>
    %c0_1 = arith.constant 0 : index
    %c0_2 = arith.constant 0 : index
    %1 = vector.load %arg1[%c0_1, %c0_2] : memref<1x256xf32, #tpu.memory_space<vmem>>, vector<1x256xf32>
    %2 = arith.mulf %0, %1 : vector<1x256xf32>
    %cst = arith.constant dense<0.000000e+00> : vector<1xf32>
    %3 = vector.multi_reduction <add>, %2, %cst [1] : vector<1x256xf32> to vector<1xf32>
    %4 = vector.shape_cast %3 : vector<1xf32> to vector<1x1xf32>
    %c0_3 = arith.constant 0 : index
    %c0_4 = arith.constant 0 : index
    %5 = memref.load %arg2[%c0_3, %c0_4] : memref<1x1xf32, #tpu.memory_space<smem>>
    %6 = vector.broadcast %5 : f32 to vector<1x1xf32>
    %7 = arith.addf %4, %6 : vector<1x1xf32>
    %c0_5 = arith.constant 0 : index
    %c0_6 = arith.constant 0 : index
    %8 = vector.load %arg3[%c0_5, %c0_6] : memref<1x1xf32, #tpu.memory_space<vmem>>, vector<1x1xf32>
    tpu.vector_store %arg3[%c0_5, %c0_6], %7 {strides = array<i32>} : memref<1x1xf32, #tpu.memory_space<vmem>>, vector<1x1xf32>,
    return
  }
}

</mosaic_0001>

<llo_original>
// kernel: tpu_custom_call.1
$region0: #{tpu_custom_call.1}
  #allocation0 [shape = 'u32[]', space=smem, size = 0x4, offset = 0x4, fixed_abs, tag = 'smem constant byte address 0x4 - core index']
  #allocation1 [shape = 'u32[144,128]{1,0:T(1,128)}', space=vmem, size = 0x12000, scoped, tag = 'internal scratch']
  #allocation2 [shape = 'f32[1,1]{1,0:T(1,128)S(6)}', space=smem, size = 0x200, scoped, tag = 'scoped memory for tpu_custom_call.1']
  %s0 = inlined_call_operand.vmem [shape: f32[1,256], index: 0, kind: input, shape index: {}]
  %s1 = inlined_call_operand.hbm [shape: f32[1,256], index: 1, kind: input, shape index: {}]
  %s2 = inlined_call_operand.<no memory space> [shape: f32[1,1], index: 2, kind: input, shape index: {}]
  %s3 = inlined_call_operand.hbm [shape: f32[1,1], index: 3, kind: output, shape index: {}]
  %s4 = sld [smem:[#allocation0]]
  $region26: #{tpu_custom_call.1} parent=0
    _
  %s6 = ssub.s32 1, %s4
  %s7 = scalar_select 0, %s6, %s4
  %8 = sst [smem:[#allocation2]] %s2
  $region1: #{tpu_custom_call.1} parent=0
    #allocation3 [shape = 'u8[1024]{0}', space=vmem, size = 0x400, scoped, tag = 'input window, operand 1, single buffered']
    #allocation4 [shape = 's32[1]{0}', space=sflag, size = 0x4, scoped, tag = 'scoped memory for tpu_custom_call.1']
    #allocation5 [shape = 's32[1]{0}', space=sflag, size = 0x4, scoped, tag = 'scoped memory for tpu_custom_call.1']
    #allocation6 [shape = 'u8[512]{0}', space=vmem, size = 0x400, scoped, tag = 'output window, operand 0, single buffered']
    %9 = vsyncpa [#allocation4], 0
    %10 = vsyncpa [#allocation5], 0
    // Predicated region
    $region2: #{tpu_custom_call.1} parent=1 // pred_check
      _
    $region3: #{tpu_custom_call.1} parent=1 // pred_check_branch
      %12 = sbr.rel (0) target = $region5
    $region4: #{tpu_custom_call.1} parent=1 // pred_region
      _
    $region5: #{tpu_custom_call.1} parent=1 // pred_fallthru
      _
    // Predicated region
    $region6: #{tpu_custom_call.1} parent=1 // pred_check
      _
    $region7: #{tpu_custom_call.1} parent=1 // pred_check_branch
      %14 = sbr.rel (0) target = $region9
    $region8: #{tpu_custom_call.1} parent=1 // pred_region
      %s16 = ssub.s32 32, 32
      %17 = vsyncadd [#allocation4], %s16
      %s19 = sshll.u32 [#allocation3], 4
      %s20 = int_to_ptr.vmem [resolvable:$true] %s19
      %22 = dma.hbm_to_vmem [thread:$0]  %s1, 32, %s20, [#allocation4]
    $region9: #{tpu_custom_call.1} parent=1 // pred_fallthru
      _
    // Predicated region
    $region10: #{tpu_custom_call.1} parent=1 // pred_check
      _
    $region11: #{tpu_custom_call.1} parent=1 // pred_check_branch
      %24 = sbr.rel (0) target = $region13
    $region12: #{tpu_custom_call.1} parent=1 // pred_region
      _
    $region13: #{tpu_custom_call.1} parent=1 // pred_fallthru
      _
    // Predicated region
    $region14: #{tpu_custom_call.1} parent=1 // pred_check
      _
    $region15: #{tpu_custom_call.1} parent=1 // pred_check_branch
      %26 = sbr.rel (0) target = $region17
    $region16: #{tpu_custom_call.1} parent=1 // pred_region
      %27 = dma.done [#allocation4], 32
    $region17: #{tpu_custom_call.1} parent=1 // pred_fallthru
      _
    %v28 = vld [vmem:[%s0] sm:$0x3]
    %v29 = vld [vmem:[#allocation3] sm:$0x3]
    %v30 = vmul.f32 %v28, %v29
    %v32 = vlaneseq
    %v33 = vshrl.u32 %v32, 7
    %v34 = vsub.s32 0, %v33
    %v35 = vrot.slane %v30, %v34
    %v36 = vlaneseq
    %v37 = vshrl.u32 %v36, 7
    %v38 = vsub.s32 1, %v37
    %v39 = vrot.slane %v30, %v38
    %vm42 = vcmask 1040384
    %v43 = vsel %vm42, %v35, 0.0
    %v44 = vsel %vm42, %v39, 0.0
    %v45 = vadd.f32 %v43, %v44
    %46 = vadd.xlane.f32.xlu0 %v45
    %v47 = vpop.xlane.xlu0 %46
    %s48 = sld [smem:[#allocation2]]
    %v49 = vstv %s48
    %v50 = vadd.f32 %v47, %v49
    %vm51 = vcmask 0
    %52 = vst.msk [vmem:[#allocation6] sm:$0x1] %vm51, %v50
    // Predicated region
    $region18: #{tpu_custom_call.1} parent=1 // pred_check
      _
    $region19: #{tpu_custom_call.1} parent=1 // pred_check_branch
      %54 = sbr.rel (0) target = $region21
    $region20: #{tpu_custom_call.1} parent=1 // pred_region
      %s56 = ssub.s32 16, 16
      %57 = vsyncadd [#allocation5], %s56
      %s59 = sshll.u32 [#allocation6], 4
      %s60 = int_to_ptr.vmem [resolvable:$true] %s59
      %62 = dma.vmem_to_hbm [thread:$0]  %s60, 16, %s3, [#allocation5]
    $region21: #{tpu_custom_call.1} parent=1 // pred_fallthru
      _
    // Predicated region
    $region22: #{tpu_custom_call.1} parent=1 // pred_check
      _
    $region23: #{tpu_custom_call.1} parent=1 // pred_check_branch
      %64 = sbr.rel (0) target = $region25
    $region24: #{tpu_custom_call.1} parent=1 // pred_region
      %65 = dma.done [#allocation5], 16
    $region25: #{tpu_custom_call.1} parent=1 // pred_fallthru
      _
    %66 = vsyncpa [#allocation4], 1
    %67 = vsyncpa [#allocation5], 1

</llo_original>
